<compile_context>
chip_gen: v7x
topology: tpu7x:2x2x1
jax: 0.10.0
libtpu: 0.0.40
codegen_flags: <defaults>
</compile_context>

<pallas_src>
import jax
import jax.numpy as jnp
from jax.experimental import pallas as pl
from jax.experimental.pallas import tpu as pltpu


def _round_up(x, m):
    return ((x + m - 1) // m) * m


def _cdiv(a, b):
    return (a + b - 1) // b


# ------------------------------- kernel --------------------------------------

def _linear_kernel(x_ref, w_ref, b_ref, o_ref, acc_ref):
    # x_ref  : (tm, tk)  bf16 row/K tile of the flattened input
    # w_ref  : (tk, Np)  bf16 transposed + lane-padded weight tile
    # b_ref  : (1,  Np)  f32  lane-padded bias (resident across the grid)
    # o_ref  : (tm, Np)  f32  lane-dense output tile (resident across the K axis)
    # acc_ref: (tm, Np)  f32  accumulator scratch
    k = pl.program_id(1)

    @pl.when(k == 0)
    def _():
        acc_ref[...] = jnp.zeros_like(acc_ref)

    acc_ref[...] += jnp.dot(x_ref[...], w_ref[...],
                            preferred_element_type=jnp.float32)

    @pl.when(k == pl.num_programs(1) - 1)
    def _():
        o_ref[...] = (acc_ref[...] + b_ref[...]).astype(o_ref.dtype)


# ------------------------------- params --------------------------------------

def init_params(key, in_channels, num_classes):
    kw, kb = jax.random.split(key)
    scale = 1.0 / jnp.sqrt(float(in_channels))
    w = scale * jax.random.normal(kw, (num_classes, in_channels), jnp.float32)
    b = scale * jax.random.normal(kb, (num_classes,), jnp.float32)
    return {"w": w, "b": b}


def prepare_params(params, *, compute_dtype=jnp.bfloat16):
    """One-time prep: transpose + lane-pad W (to a multiple of 128 classes) and
    pad b. Done once, outside the per-call forward path."""
    w, b = params["w"], params["b"]
    num_classes, in_channels = w.shape
    n_pad = _round_up(max(num_classes, 1), 128)
    w_t = jnp.zeros((in_channels, n_pad), compute_dtype)
    w_t = w_t.at[:, :num_classes].set(jnp.transpose(w).astype(compute_dtype))
    b_p = jnp.zeros((1, n_pad), jnp.float32)
    b_p = b_p.at[:, :num_classes].set(b.astype(jnp.float32))
    return {"w_t": w_t, "b_p": b_p, "num_classes": num_classes}


# ------------------------------- wrapper --------------------------------------

def fast_rcnn_predictor_forward(x, prepared, *, block_m=1024, block_k=2048):
    """x: (..., in_channels); prepared: output of prepare_params()."""
    w_t, b_p = prepared["w_t"], prepared["b_p"]
    num_classes = prepared["num_classes"]
    K, Np = w_t.shape
    assert block_k % 128 == 0 and block_m % 8 == 0

    lead_shape = x.shape[:-1]
    x2 = x.reshape(-1, K)
    if x2.dtype != w_t.dtype:
        x2 = x2.astype(w_t.dtype)      # bf16 operands; accumulation stays f32
    M = x2.shape[0]

    # Row tile: sublane-aligned, and split into >=2 steps for large M so both
    # v7x TensorCores get sharded work on the parallel axis.
    tm = min(block_m, max(8, _round_up(_cdiv(M, 2), 8)))
    # K tile: cap the VMEM working set for large in_channels.
    tk = K if K <= block_k else block_k

    grid = (_cdiv(M, tm), _cdiv(K, tk))

    out = pl.pallas_call(
        _linear_kernel,
        out_shape=jax.ShapeDtypeStruct((M, Np), jnp.float32),
        grid=grid,
        in_specs=[
            pl.BlockSpec((tm, tk), lambda i, k: (i, k)),
            pl.BlockSpec((tk, Np), lambda i, k: (k, 0)),
            pl.BlockSpec((1, Np), lambda i, k: (0, 0)),
        ],
        out_specs=pl.BlockSpec((tm, Np), lambda i, k: (i, 0)),
        scratch_shapes=[pltpu.VMEM((tm, Np), jnp.float32)],
        compiler_params=pltpu.CompilerParams(
            dimension_semantics=("parallel", "arbitrary"),
            vmem_limit_bytes=32 * 1024 * 1024,
        ),
    )(x2, w_t, b_p)

    out = out[:, :num_classes]
    return out.reshape(*lead_shape, num_classes)


# --------------------------------- main ----------------------------------------

if __name__ == "__main__":
    key = jax.random.PRNGKey(0)
    k_x, k_p = jax.random.split(key)

    batch, in_channels, num_classes = 2, 32, 4
    x = jax.random.normal(k_x, (batch, in_channels), jnp.float32)
    params = init_params(k_p, in_channels, num_classes)
    prepared = prepare_params(params)

    out = fast_rcnn_predictor_forward(x, prepared)
    out = jax.block_until_ready(out)

    assert out.shape == (batch, num_classes), out.shape
    assert jnp.all(jnp.isfinite(out))

    # Reference: plain JAX linear (matches PyTorch nn.Linear semantics).
    # bf16 operands => loosened tolerance vs the f32 reference.
    ref = x @ params["w"].T + params["b"]
    assert jnp.allclose(out, ref, atol=2e-2, rtol=2e-2), \
        float(jnp.max(jnp.abs(out - ref)))

    print("KERNEL_OK")
</pallas_src>

<mosaic_0001>
module attributes {stable_mosaic.version = 11 : i64} {
  func.func @_linear_kernel(%arg0: i32, %arg1: i32, %arg2: memref<8x32xbf16, #tpu.memory_space<vmem>>, %arg3: memref<32x128xbf16, #tpu.memory_space<vmem>>, %arg4: memref<1x128xf32, #tpu.memory_space<vmem>>, %arg5: memref<8x128xf32, #tpu.memory_space<vmem>>, %arg6: memref<8x128xf32, #tpu.memory_space<vmem>>) attributes {dimension_semantics = [#tpu.dimension_semantics<parallel>, #tpu.dimension_semantics<arbitrary>], iteration_bounds = array<i64: 1, 1>, scalar_prefetch = 0 : i64, scratch_operands = 1 : i64, tpu.core_type = #tpu.core_type<tc>, window_params = [{transform_indices = @transform_0, window_bounds = array<i64: 8, 32>}, {transform_indices = @transform_1, window_bounds = array<i64: 32, 128>}, {pipeline_mode = #tpu.pipeline_mode<synchronous>, transform_indices = @transform_2, window_bounds = array<i64: 1, 128>}, {transform_indices = @transform_3, window_bounds = array<i64: 8, 128>}]} {
    %c0_i32 = arith.constant 0 : i32
    %0 = arith.cmpi eq, %arg1, %c0_i32 : i32
    %1 = arith.extui %0 : i1 to i32
    %c0_i32_0 = arith.constant 0 : i32
    %2 = arith.cmpi ne, %1, %c0_i32_0 : i32
    scf.if %2 {
      %cst_10 = arith.constant 0.000000e+00 : f32
      %12 = vector.broadcast %cst_10 : f32 to vector<8x128xf32>
      %c0_11 = arith.constant 0 : index
      %c0_12 = arith.constant 0 : index
      %13 = vector.load %arg6[%c0_11, %c0_12] : memref<8x128xf32, #tpu.memory_space<vmem>>, vector<8x128xf32>
      tpu.vector_store %arg6[%c0_11, %c0_12], %12 {strides = array<i32>} : memref<8x128xf32, #tpu.memory_space<vmem>>, vector<8x128xf32>,
    } else {
    }
    %c0 = arith.constant 0 : index
    %c0_1 = arith.constant 0 : index
    %3 = vector.load %arg6[%c0, %c0_1] : memref<8x128xf32, #tpu.memory_space<vmem>>, vector<8x128xf32>
    %c0_2 = arith.constant 0 : index
    %c0_3 = arith.constant 0 : index
    %4 = vector.load %arg2[%c0_2, %c0_3] : memref<8x32xbf16, #tpu.memory_space<vmem>>, vector<8x32xbf16>
    %c0_4 = arith.constant 0 : index
    %c0_5 = arith.constant 0 : index
    %5 = vector.load %arg3[%c0_4, %c0_5] : memref<32x128xbf16, #tpu.memory_space<vmem>>, vector<32x128xbf16>
    %cst = arith.constant dense<0.000000e+00> : vector<8x128xf32>
    %6 = tpu.matmul %4, %5, %cst {dimension_numbers = #tpu.dot_dimension_numbers<[1], [0], [0], [1], [0, 0, 1, 1], [], []>} : vector<8x32xbf16>, vector<32x128xbf16>, vector<8x128xf32> -> vector<8x128xf32>
    %7 = arith.addf %3, %6 : vector<8x128xf32>
    %c0_6 = arith.constant 0 : index
    %c0_7 = arith.constant 0 : index
    %8 = vector.load %arg6[%c0_6, %c0_7] : memref<8x128xf32, #tpu.memory_space<vmem>>, vector<8x128xf32>
    tpu.vector_store %arg6[%c0_6, %c0_7], %7 {strides = array<i32>} : memref<8x128xf32, #tpu.memory_space<vmem>>, vector<8x128xf32>,
    %c0_i32_8 = arith.constant 0 : i32
    %9 = arith.cmpi eq, %arg1, %c0_i32_8 : i32
    %10 = arith.extui %9 : i1 to i32
    %c0_i32_9 = arith.constant 0 : i32
    %11 = arith.cmpi ne, %10, %c0_i32_9 : i32
    scf.if %11 {
      %c0_10 = arith.constant 0 : index
      %c0_11 = arith.constant 0 : index
      %12 = vector.load %arg6[%c0_10, %c0_11] : memref<8x128xf32, #tpu.memory_space<vmem>>, vector<8x128xf32>
      %c0_12 = arith.constant 0 : index
      %c0_13 = arith.constant 0 : index
      %13 = vector.load %arg4[%c0_12, %c0_13] : memref<1x128xf32, #tpu.memory_space<vmem>>, vector<1x128xf32>
      %14 = vector.broadcast %13 : vector<1x128xf32> to vector<8x128xf32>
      %15 = arith.addf %12, %14 : vector<8x128xf32>
      %c0_14 = arith.constant 0 : index
      %c0_15 = arith.constant 0 : index
      %16 = vector.load %arg5[%c0_14, %c0_15] : memref<8x128xf32, #tpu.memory_space<vmem>>, vector<8x128xf32>
      tpu.vector_store %arg5[%c0_14, %c0_15], %15 {strides = array<i32>} : memref<8x128xf32, #tpu.memory_space<vmem>>, vector<8x128xf32>,
    } else {
    }
    return
  }
  func.func @transform_0(%arg0: i32, %arg1: i32) -> (i32, i32) {
    %c0_i32 = arith.constant 0 : i32
    return %arg0, %arg1 : i32, i32
  }
  func.func @transform_1(%arg0: i32, %arg1: i32) -> (i32, i32) {
    %c0_i32 = arith.constant 0 : i32
    %c0_i32_0 = arith.constant 0 : i32
    return %arg1, %c0_i32 : i32, i32
  }
  func.func @transform_2(%arg0: i32, %arg1: i32) -> (i32, i32) {
    %c0_i32 = arith.constant 0 : i32
    %c0_i32_0 = arith.constant 0 : i32
    %c0_i32_1 = arith.constant 0 : i32
    return %c0_i32, %c0_i32_0 : i32, i32
  }
  func.func @transform_3(%arg0: i32, %arg1: i32) -> (i32, i32) {
    %c0_i32 = arith.constant 0 : i32
    %c0_i32_0 = arith.constant 0 : i32
    return %arg0, %c0_i32 : i32, i32
  }
}

</mosaic_0001>

<llo_original>
// kernel: tpu_custom_call.1
$region0: #{tpu_custom_call.1}
  #allocation0 [shape = 'u32[]', space=smem, size = 0x4, offset = 0x4, fixed_abs, tag = 'smem constant byte address 0x4 - core index']
  #allocation1 [shape = 'u32[144,128]{1,0:T(1,128)}', space=vmem, size = 0x12000, scoped, tag = 'internal scratch']
  #allocation2 [shape = 'f32[8,128]{1,0:T(8,128)}', space=vmem, size = 0x1000, scoped, tag = 'scratch operand']
  %s0 = inlined_call_operand.hbm [shape: bf16[2,32], index: 0, kind: input, shape index: {}]
  %s1 = inlined_call_operand.hbm [shape: bf16[32,128], index: 1, kind: input, shape index: {}]
  %s2 = inlined_call_operand.vmem [shape: f32[1,128], index: 2, kind: input, shape index: {}]
  %s3 = inlined_call_operand.hbm [shape: f32[2,128], index: 3, kind: output, shape index: {}]
  %s4 = sld [smem:[#allocation0]]
  $region38: #{tpu_custom_call.1} parent=0
    _
  %s6 = ssub.s32 1, %s4
  %s7 = scalar_select 0, %s6, %s4
  $region1: #{tpu_custom_call.1} parent=0
    #allocation3 [shape = 'u8[2048]{0}', space=vmem, size = 0x800, scoped, tag = 'input window, operand 0, single buffered']
    #allocation4 [shape = 's32[1]{0}', space=sflag, size = 0x4, scoped, tag = 'scoped memory for tpu_custom_call.1']
    #allocation5 [shape = 's32[1]{0}', space=sflag, size = 0x4, scoped, tag = 'scoped memory for tpu_custom_call.1']
    #allocation6 [shape = 'u8[8192]{0}', space=vmem, size = 0x2000, scoped, tag = 'input window, operand 1, single buffered']
    #allocation7 [shape = 's32[1]{0}', space=sflag, size = 0x4, scoped, tag = 'scoped memory for tpu_custom_call.1']
    #allocation8 [shape = 'u8[4096]{0}', space=vmem, size = 0x1000, scoped, tag = 'output window, operand 0, single buffered']
    %8 = vsyncpa [#allocation4], 0
    %9 = vsyncpa [#allocation7], 0
    %10 = vsyncpa [#allocation5], 0
    // Predicated region
    $region2: #{tpu_custom_call.1} parent=1 // pred_check
      _
    $region3: #{tpu_custom_call.1} parent=1 // pred_check_branch
      %12 = sbr.rel (0) target = $region5
    $region4: #{tpu_custom_call.1} parent=1 // pred_region
      %s14 = ssub.s32 64, 16
      %15 = vsyncadd [#allocation4], %s14
      %s16 = sshll.u32 [#allocation3], 4
      %s17 = int_to_ptr.vmem [resolvable:$true] %s16
      %22 = dma.hbm_to_vmem [thread:$0]  %s0, 16, %s17, [#allocation4], 16, 16, 1
    $region5: #{tpu_custom_call.1} parent=1 // pred_fallthru
      _
    // Predicated region
    $region6: #{tpu_custom_call.1} parent=1 // pred_check
      _
    $region7: #{tpu_custom_call.1} parent=1 // pred_check_branch
      %24 = sbr.rel (0) target = $region9
    $region8: #{tpu_custom_call.1} parent=1 // pred_region
      %s26 = ssub.s32 256, 256
      %27 = vsyncadd [#allocation7], %s26
      %s28 = sshll.u32 [#allocation6], 4
      %s29 = int_to_ptr.vmem [resolvable:$true] %s28
      %34 = dma.hbm_to_vmem [thread:$0]  %s1, 256, %s29, [#allocation7], 64, 64, 4
    $region9: #{tpu_custom_call.1} parent=1 // pred_fallthru
      _
    // Predicated region
    $region10: #{tpu_custom_call.1} parent=1 // pred_check
      _
    $region11: #{tpu_custom_call.1} parent=1 // pred_check_branch
      %36 = sbr.rel (0) target = $region13
    $region12: #{tpu_custom_call.1} parent=1 // pred_region
      _
    $region13: #{tpu_custom_call.1} parent=1 // pred_fallthru
      _
    // Predicated region
    $region14: #{tpu_custom_call.1} parent=1 // pred_check
      _
    $region15: #{tpu_custom_call.1} parent=1 // pred_check_branch
      %38 = sbr.rel (0) target = $region17
    $region16: #{tpu_custom_call.1} parent=1 // pred_region
      %39 = dma.done [#allocation4], 64
    $region17: #{tpu_custom_call.1} parent=1 // pred_fallthru
      _
    // Predicated region
    $region18: #{tpu_custom_call.1} parent=1 // pred_check
      _
    $region19: #{tpu_custom_call.1} parent=1 // pred_check_branch
      %41 = sbr.rel (0) target = $region21
    $region20: #{tpu_custom_call.1} parent=1 // pred_region
      %42 = dma.done [#allocation7], 256
    $region21: #{tpu_custom_call.1} parent=1 // pred_fallthru
      _
    %p44 = scmp.eq.s32.totalorder 0, 0
    // Predicated region
    $region22: #{tpu_custom_call.1} parent=1 // pred_check
      %p45 = pneg %p44
    $region23: #{tpu_custom_call.1} parent=1 // pred_check_branch
      %47 = sbr.rel (%p45) target = $region25
    $region24: #{tpu_custom_call.1} parent=1 // pred_region
      %48 = vst [vmem:[#allocation2] sm:$0xff] 0.0
    $region25: #{tpu_custom_call.1} parent=1 // pred_fallthru
      _
    %v49 = vld [vmem:[#allocation2] sm:$0xff]
    %v50 = vld [vmem:[#allocation3] sm:$0x1]
    %v51 = vld [vmem:[#allocation3 + $0x1] sm:$0x1]
    %v52 = vld [vmem:[#allocation3 + $0x2] sm:$0x1]
    %v53 = vld [vmem:[#allocation3 + $0x3] sm:$0x1]
    %v54 = vld [vmem:[#allocation6] sm:$0xf]
    %v55 = vld [vmem:[#allocation6 + $0x4] sm:$0xf]
    %v56 = vld [vmem:[#allocation6 + $0x8] sm:$0xf]
    %v57 = vld [vmem:[#allocation6 + $0xc] sm:$0xf]
    %v62 = vcombine.low %v50, %v51
    %v63 = vcombine.low %v52, %v53
    %v65 = vunpack.c.l.s4 1966171168
    %v66 = vunpack.c.0.s8 %v65
    %v67 = vlaneseq
    %v68 = vshrl.u32 %v67, 7
    %v69 = vsub.s32 %v66, %v68
    %v70 = vrot.slane %v62, %v69
    %v72 = vunpack.c.l.s4 1966171168
    %v73 = vunpack.c.0.s8 %v72
    %v74 = vlaneseq
    %v75 = vshrl.u32 %v74, 7
    %v76 = vsub.s32 %v73, %v75
    %v77 = vrot.slane %v63, %v76
    %v78 = vcombine.low %v70, %v77
    %v80 = vunpack.c.l.s4 1966171168
    %v81 = vunpack.c.0.s8 %v80
    %v82 = vlaneseq
    %v83 = vshrl.u32 %v82, 7
    %v84 = vsub.s32 %v81, %v83
    %v85 = vrot.slane %v78, %v84
    %v90 = vunpack.c.l.b16 %v54
    %v91 = vunpack.c.l.b16 %v55
    %v92 = vunpack.c.l.b16 %v56
    %v93 = vunpack.c.l.b16 %v57
    %v94 = vpack.c.b16 %v91, %v90
    %v95 = vpack.c.b16 %v93, %v92
    %vm98 = vcmask 261120
    %v100 = vsel %vm98, %v85, 0
    %102 = vmatprep.subr.bf16.mxu0 0
    %103 = vmatpush1.bf16.msra.mxu0 %v94
    %104 = vmatprep.subr.bf16.mxu0 0
    %105 = vmatpush1.bf16.msra.mxu0 %v95
    %106 = vmatprep.subr.bf16.mxu0 0
    %107 = vmatpush1.bf16.msra.mxu0 0
    %108 = vmatprep.subr.bf16.mxu0 0
    %109 = vmatpush1.bf16.msra.mxu0 0
    %110 = vmatprep.subr.bf16.mxu0 0
    %111 = vmatpush1.bf16.msra.mxu0 0
    %112 = vmatprep.subr.bf16.mxu0 0
    %113 = vmatpush1.bf16.msra.mxu0 0
    %114 = vmatprep.subr.bf16.mxu0 0
    %115 = vmatpush1.bf16.msra.mxu0 0
    %116 = vmatprep.subr.bf16.mxu0 0
    %117 = vmatpush1.bf16.msra.mxu0 0
    %118 = vmatprep.subr.bf16.mxu0 0
    %119 = vmatpush1.bf16.msra.mxu0 0
    %120 = vmatprep.subr.bf16.mxu0 0
    %121 = vmatpush1.bf16.msra.mxu0 0
    %122 = vmatprep.subr.bf16.mxu0 0
    %123 = vmatpush1.bf16.msra.mxu0 0
    %124 = vmatprep.subr.bf16.mxu0 0
    %125 = vmatpush1.bf16.msra.mxu0 0
    %126 = vmatprep.subr.bf16.mxu0 0
    %127 = vmatpush1.bf16.msra.mxu0 0
    %128 = vmatprep.subr.bf16.mxu0 0
    %129 = vmatpush1.bf16.msra.mxu0 0
    %130 = vmatprep.subr.bf16.mxu0 0
    %131 = vmatpush1.bf16.msra.mxu0 0
    %132 = vmatprep.subr.bf16.mxu0 0
    %133 = vmatpush1.bf16.msra.mxu0 0
    %134 = vmatprep.mubr.bf16.mxu0 0
    %135 = vmatmul.mubr.bf16.gmra.mrb[0].mxu0 %v100
    %v136 = vpop.f32.mrb[0].mxu0
    %v137 = vadd.f32 0.0, %v136
    %v138 = vpop.f32.mrb[0].mxu0
    %v139 = vpop.f32.mrb[0].mxu0
    %v140 = vpop.f32.mrb[0].mxu0
    %141 = vdwg.mxu0
    %v142 = vadd.f32 %v49, %v137
    %143 = vst [vmem:[#allocation2] sm:$0xff] %v142
    // Predicated region
    $region26: #{tpu_custom_call.1} parent=1 // pred_check
      %p144 = pneg %p44
    $region27: #{tpu_custom_call.1} parent=1 // pred_check_branch
      %146 = sbr.rel (%p144) target = $region29
    $region28: #{tpu_custom_call.1} parent=1 // pred_region
      %v147 = vld [vmem:[#allocation2] sm:$0xff]
      %v148 = vld [vmem:[%s2] sm:$0x1]
      %v150 = vlaneseq
      %v151 = vshrl.u32 %v150, 7
      %v152 = vsub.s32 0, %v151
      %v153 = vrot.slane %v148, %v152
      %v155 = vadd.f32 %v147, %v153
      %156 = vst [vmem:[#allocation8] sm:$0xff] %v155
    $region29: #{tpu_custom_call.1} parent=1 // pred_fallthru
      _
    // Predicated region
    $region30: #{tpu_custom_call.1} parent=1 // pred_check
      _
    $region31: #{tpu_custom_call.1} parent=1 // pred_check_branch
      %158 = sbr.rel (0) target = $region33
    $region32: #{tpu_custom_call.1} parent=1 // pred_region
      %s160 = ssub.s32 128, 32
      %161 = vsyncadd [#allocation5], %s160
      %s162 = sshll.u32 [#allocation8], 4
      %s163 = int_to_ptr.vmem [resolvable:$true] %s162
      %168 = dma.vmem_to_hbm [thread:$0]  %s163, 32, %s3, [#allocation5], 32, 32, 2
    $region33: #{tpu_custom_call.1} parent=1 // pred_fallthru
      _
    // Predicated region
    $region34: #{tpu_custom_call.1} parent=1 // pred_check
      _
    $region35: #{tpu_custom_call.1} parent=1 // pred_check_branch
      %170 = sbr.rel (0) target = $region37
    $region36: #{tpu_custom_call.1} parent=1 // pred_region
      %171 = dma.done [#allocation5], 128
    $region37: #{tpu_custom_call.1} parent=1 // pred_fallthru
      _
    %172 = vsyncpa [#allocation4], 1
    %173 = vsyncpa [#allocation7], 1
    %174 = vsyncpa [#allocation5], 1

</llo_original>
